<compile_context>
chip_gen: v6e
topology: v6e:2x2x1
jax: 0.10.0
libtpu: 0.0.40
codegen_flags: <defaults>
</compile_context>

<pallas_src>
import math

import jax
import jax.numpy as jnp
from jax.experimental import pallas as pl
from jax.experimental.pallas import tpu as pltpu


# ---------------------------------------------------------------------------
# Hardware-aware VMEM budget (v5e/v6e: 128 MiB, v7x: 64 MiB per TensorCore).
# ---------------------------------------------------------------------------
def _vmem_caps():
    cap = 64 << 20  # conservative default (v7x per-core VMEM)
    try:
        info = pltpu.get_tpu_info()
        q = int(getattr(info, "vmem_capacity_bytes", 0) or 0)
        if q >= (32 << 20):
            cap = q
    except Exception:
        pass
    budget = min((cap * 3) // 4, 112 << 20)   # pipelined working-set budget
    limit_max = cap - (8 << 20)               # headroom for Mosaic scratch
    return budget, limit_max


def _lcm(a, b):
    return a * b // math.gcd(a, b)


# ---------------------------------------------------------------------------
# One-time probe: does pltpu.roll follow the numpy convention
# (np.roll(x, 1)[0] == x[-1])?  Only needed for the flat (D < 128) path; the
# D-last path shifts by exactly half of a size-2*half ring, which is its own
# inverse and therefore direction independent.
# ---------------------------------------------------------------------------
_ROLL_MATCHES_NUMPY = None


def _roll_matches_numpy() -> bool:
    global _ROLL_MATCHES_NUMPY
    if _ROLL_MATCHES_NUMPY is None:
        def probe(x_ref, o_ref):
            o_ref[...] = pltpu.roll(x_ref[...], 1, 1)

        with jax.ensure_compile_time_eval():
            x = jnp.tile(jnp.arange(128, dtype=jnp.float32)[None, :], (8, 1))
            out = pl.pallas_call(
                probe, out_shape=jax.ShapeDtypeStruct((8, 128), jnp.float32)
            )(x)
            _ROLL_MATCHES_NUMPY = bool(out[0, 0] == 127.0)
    return _ROLL_MATCHES_NUMPY


# ---------------------------------------------------------------------------
# Kernels
# ---------------------------------------------------------------------------
def _make_dlast_kernel(n):
    """Blocks (tr, ts, D): out = x*cos + roll(x, D/2, axis=-1) * sin_signed."""

    def kernel(*refs):
        x_refs = refs[:n]
        cos_ref, sin_ref = refs[n:n + 2]
        o_refs = refs[n + 2:]
        cos = cos_ref[...]            # (ts, D) broadcasts against (tr, ts, D)
        sin_s = sin_ref[...]
        half = x_refs[0].shape[-1] // 2
        for x_ref, o_ref in zip(x_refs, o_refs):
            x = x_ref[...].astype(jnp.float32)
            rot = pltpu.roll(x, half, 2)          # direction independent (shift = D/2)
            o_ref[...] = (x * cos + rot * sin_s).astype(o_ref.dtype)

    return kernel


def _make_flat_kernel(n, shift_a, shift_b):
    """Blocks (tr, tc) over the flattened (S*D) axis: lane-dense for D < 128.

    out[p] = x[p]*cos[p] + roll_a(x)[p]*t_a[p] + roll_b(x)[p]*t_b[p], where the
    masked tables t_a/t_b select the correct +-D/2 neighbour and fold the sign.
    """

    def kernel(*refs):
        x_refs = refs[:n]
        cos_ref, ta_ref, tb_ref = refs[n:n + 3]
        o_refs = refs[n + 3:]
        cos = cos_ref[...]            # (1, tc) broadcasts against (tr, tc)
        t_a = ta_ref[...]
        t_b = tb_ref[...]
        for x_ref, o_ref in zip(x_refs, o_refs):
            x = x_ref[...].astype(jnp.float32)
            ra = pltpu.roll(x, shift_a, 1)
            rb = pltpu.roll(x, shift_b, 1)
            o_ref[...] = (x * cos + ra * t_a + rb * t_b).astype(o_ref.dtype)

    return kernel


# ---------------------------------------------------------------------------
# Jitted apply paths
# ---------------------------------------------------------------------------
@jax.jit
def _rope_dlast(xs, cos2d, sin2d):
    """Primary path for D % 128 == 0; also the fallback for other D."""
    x0 = xs[0]
    *lead, S, D = x0.shape
    rows = math.prod(lead) if lead else 1
    n = len(xs)
    itemsize = x0.dtype.itemsize
    budget, limit_max = _vmem_caps()

    x3 = tuple(x.reshape(rows, S, D) for x in xs)
    cos_t = cos2d[:S]
    sin_t = sin2d[:S]

    pack = max(8, 32 // itemsize)                      # sublane packing (f32/bf16/int8)
    # seq block: keep each f32 table buffer around 2 MiB
    ts_cap = max(pack, ((2 << 20) // (D * 4)) // pack * pack)
    ts = S if S <= ts_cap else ts_cap
    table_vmem = 2 * 2 * ts * D * 4                    # 2 tables, double buffered
    per_row = 2 * 2 * n * ts * D * itemsize + 4 * ts * D * 4   # io buffers + f32 temps
    max_tr = max(1, int((budget - table_vmem) // per_row))
    if rows <= max_tr:
        tr = rows
    else:
        tr = max_tr
        for cand in range(tr, max(0, tr // 2 - 1), -1):        # prefer even division
            if rows % cand == 0:
                tr = cand
                break
    # Megacore (v7x has 2 TCs): keep >= 2 blocks on a parallel axis.
    if pl.cdiv(rows, tr) * pl.cdiv(S, ts) == 1:
        if rows >= 2:
            tr = pl.cdiv(rows, 2)
        elif S >= 2 * pack:
            ts = max(pack, pl.cdiv(pl.cdiv(S, 2), pack) * pack)

    grid = (pl.cdiv(S, ts), pl.cdiv(rows, tr))         # rows innermost: tables stay resident
    x_spec = pl.BlockSpec((tr, ts, D), lambda s, r: (r, s, 0))
    t_spec = pl.BlockSpec((ts, D), lambda s, r: (s, 0))

    vmem_need = 2 * 2 * n * tr * ts * D * itemsize + 2 * 2 * ts * D * 4 + (2 << 20)
    vmem_limit = int(min(max(vmem_need + (4 << 20), 16 << 20), limit_max))
    elems = n * rows * S * D
    cost = pl.CostEstimate(flops=3 * elems, transcendentals=0,
                           bytes_accessed=2 * elems * itemsize + 2 * S * D * 4)

    outs = pl.pallas_call(
        _make_dlast_kernel(n),
        out_shape=tuple(jax.ShapeDtypeStruct((rows, S, D), x.dtype) for x in xs),
        grid=grid,
        in_specs=[x_spec] * n + [t_spec] * 2,
        out_specs=tuple([x_spec] * n),
        compiler_params=pltpu.CompilerParams(
            dimension_semantics=("parallel", "parallel"),
            vmem_limit_bytes=vmem_limit),
        cost_estimate=cost,
    )(*x3, cos_t, sin_t)
    if not isinstance(outs, (list, tuple)):
        outs = (outs,)
    return tuple(o.reshape(x0.shape[:-2] + (S, D)) for o in outs)


@jax.jit
def _rope_flat(xs, cos_flat, t_a_flat, t_b_flat):
    """Lane-dense flattened path for D % 128 != 0 (e.g. head dims 32/64)."""
    x0 = xs[0]
    *lead, S, D = x0.shape
    rows = math.prod(lead) if lead else 1
    L = S * D
    half = D // 2
    n = len(xs)
    itemsize = x0.dtype.itemsize
    budget, limit_max = _vmem_caps()

    flats = tuple(x.reshape(rows, L) for x in xs)
    tabs = (cos_flat[:, :L], t_a_flat[:, :L], t_b_flat[:, :L])

    unit = _lcm(D, 128)                                 # column blocks hold whole D groups
    pack = max(8, 32 // itemsize)
    tc_cap = max(unit, (32768 // unit) * unit)          # plenty lane-dense, bounded
    tc = L if L <= tc_cap else tc_cap
    # (1, tc) f32 table blocks pad to 8 sublanes in VMEM: account for the 8x.
    table_vmem = 3 * 2 * 8 * tc * 4
    while tc > unit and table_vmem > budget // 4:       # shrink tc, never overflow budget
        tc = max(unit, (tc // 2) // unit * unit)
        table_vmem = 3 * 2 * 8 * tc * 4
    per_row = 2 * 2 * n * tc * itemsize + 4 * tc * 4    # dbl-buffered io + f32 temps
    max_tr = max(pack, int((budget - table_vmem) // per_row) // pack * pack)
    if rows <= max_tr:
        tr = rows
    else:
        tr = (max_tr // pack) * pack
        for cand in range(tr, max(pack - 1, tr // 2 - 1), -pack):   # prefer even division
            if rows % cand == 0:
                tr = cand
                break
    # Megacore (v7x): keep >= 2 blocks on a parallel axis.
    if pl.cdiv(rows, tr) * pl.cdiv(L, tc) == 1:
        if rows >= 2 * pack:
            tr = max(pack, pl.cdiv(pl.cdiv(rows, 2), pack) * pack)
        elif L >= 2 * unit:
            tc = max(unit, pl.cdiv(pl.cdiv(L, 2), unit) * unit)

    grid = (pl.cdiv(L, tc), pl.cdiv(rows, tr))          # rows innermost: tables DMA'd once/col
    x_spec = pl.BlockSpec((tr, tc), lambda c, r: (r, c))
    t_spec = pl.BlockSpec((1, tc), lambda c, r: (0, c))

    vmem_need = 2 * 2 * n * tr * tc * itemsize + 3 * 2 * 8 * tc * 4 + (2 << 20)
    vmem_limit = int(min(max(vmem_need + (4 << 20), 16 << 20), limit_max))
    elems = n * rows * L
    cost = pl.CostEstimate(flops=5 * elems, transcendentals=0,
                           bytes_accessed=2 * elems * itemsize + 3 * L * 4)

    shift_a = half                   # pairs with x[p - half] under numpy roll convention
    shift_b = (tc - half) % tc       # pairs with x[p + half]

    outs = pl.pallas_call(
        _make_flat_kernel(n, shift_a, shift_b),
        out_shape=tuple(jax.ShapeDtypeStruct((rows, L), x.dtype) for x in xs),
        grid=grid,
        in_specs=[x_spec] * n + [t_spec] * 3,
        out_specs=tuple([x_spec] * n),
        compiler_params=pltpu.CompilerParams(
            dimension_semantics=("parallel", "parallel"),
            vmem_limit_bytes=vmem_limit),
        cost_estimate=cost,
    )(*flats, *tabs)
    if not isinstance(outs, (list, tuple)):
        outs = (outs,)
    return tuple(o.reshape(x0.shape[:-2] + (S, D)) for o in outs)


# ---------------------------------------------------------------------------
# Module wrapper (mirrors the torch RotaryEmbedding forward semantics)
# ---------------------------------------------------------------------------
class RotaryEmbedding:
    """JAX/Pallas port of the torch RotaryEmbedding module (forward pass)."""

    def __init__(self, dim: int):
        assert dim % 2 == 0, "rotary dim must be even"
        self.dim = dim
        self._dlast = (dim % 128 == 0)
        self._seq_len_cached = None
        self._tables = None

    def _get_tables(self, seq_len: int):
        if self._tables is None or self._seq_len_cached != seq_len:
            dim, half = self.dim, self.dim // 2
            inv_freq = 1.0 / (10000.0 ** (jnp.arange(0, dim, 2, dtype=jnp.float32) / dim))
            t = jnp.arange(seq_len, dtype=jnp.float32)
            freqs = t[:, None] * inv_freq[None, :]                 # (S, D/2)
            emb = jnp.concatenate([freqs, freqs], axis=-1)         # (S, D)
            cos = jnp.cos(emb)
            sin = jnp.sin(emb)
            if self._dlast:
                # single sign-folded sin table for the single-roll kernel
                sin_signed = jnp.concatenate([-sin[:, :half], sin[:, half:]], axis=-1)
                self._tables = ("dlast", cos, sin_signed)
            else:
                zeros = jnp.zeros((seq_len, half), dtype=jnp.float32)
                sin_lo = jnp.concatenate([-sin[:, :half], zeros], axis=-1)   # coeff of x[p+half]
                sin_hi = jnp.concatenate([zeros, sin[:, half:]], axis=-1)    # coeff of x[p-half]
                L = seq_len * dim
                cos_f = cos.reshape(1, L)
                lo = sin_lo.reshape(1, L)
                hi = sin_hi.reshape(1, L)
                if _roll_matches_numpy():
                    t_a, t_b = hi, lo            # shift=half -> x[p-half]
                else:
                    t_a, t_b = lo, hi
                self._tables = ("flat", cos_f, t_a, t_b)
            self._seq_len_cached = seq_len
        return self._tables

    def _apply(self, xs):
        mode, *tabs = self._tables
        if mode == "dlast":
            return _rope_dlast(xs, tabs[0], tabs[1])
        cos_f, t_a, t_b = tabs
        try:
            return _rope_flat(xs, cos_f, t_a, t_b)
        except Exception as e:  # pragma: no cover - safety net, never silent
            print(f"[rotary] flat Pallas path failed ({type(e).__name__}); "
                  f"falling back to D-last kernel")
            S, D = self._seq_len_cached, self.dim
            cos2 = cos_f.reshape(S, D)
            sin2 = (t_a + t_b).reshape(S, D)             # reconstruct sign-folded sin
            return _rope_dlast(xs, cos2, sin2)

    def __call__(self, q, k):
        self._get_tables(q.shape[-2])
        if k is None:
            (q_out,) = self._apply((q,))
            return q_out, None
        if k.shape == q.shape and k.dtype == q.dtype:
            q_out, k_out = self._apply((q, k))           # fused: one launch for q and k
        else:
            (q_out,) = self._apply((q,))
            (k_out,) = self._apply((k,))
        return q_out, k_out


# ---------------------------------------------------------------------------
# Pure-JAX reference mirroring the torch code exactly
# ---------------------------------------------------------------------------
def _reference(q, k, dim):
    inv_freq = 1.0 / (10000.0 ** (jnp.arange(0, dim, 2, dtype=jnp.float32) / dim))
    t = jnp.arange(q.shape[-2], dtype=jnp.float32)
    freqs = jnp.einsum("i,j->ij", t, inv_freq)
    emb = jnp.concatenate([freqs, freqs], axis=-1)
    cos, sin = jnp.cos(emb), jnp.sin(emb)

    def apply(x):
        xf = x.astype(jnp.float32)
        c = cos[: x.shape[-2], :]
        s = sin[: x.shape[-2], :]
        half = dim // 2
        rot = jnp.concatenate([-xf[..., half:], xf[..., :half]], axis=-1)
        return (xf * c + rot * s).astype(x.dtype)

    return apply(q), (apply(k) if k is not None else None)


if __name__ == "__main__":
    key = jax.random.PRNGKey(0)
    kq, kk, kq2, kk2 = jax.random.split(key, 4)

    # Test 1: D = 32 (< 128) -> lane-dense flattened path, fused q/k.
    B, H, S, D = 2, 4, 8, 32
    q = jax.random.normal(kq, (B, H, S, D), dtype=jnp.float32)
    k = jax.random.normal(kk, (B, H, S, D), dtype=jnp.float32)
    rope = RotaryEmbedding(dim=D)
    q_out, k_out = rope(q, k)
    jax.block_until_ready(q_out)
    jax.block_until_ready(k_out)
    q_ref, k_ref = _reference(q, k, D)
    assert jnp.allclose(q_out, q_ref, atol=1e-5, rtol=1e-5)
    assert jnp.allclose(k_out, k_ref, atol=1e-5, rtol=1e-5)

    # k = None path.
    q_only, none_out = rope(q, None)
    jax.block_until_ready(q_only)
    assert none_out is None
    assert jnp.allclose(q_only, q_ref, atol=1e-5, rtol=1e-5)

    # Test 2: D = 128 -> D-last single-roll path, bf16 inputs (f32 math, cast back).
    B2, H2, S2, D2 = 2, 8, 64, 128
    q2 = jax.random.normal(kq2, (B2, H2, S2, D2), dtype=jnp.bfloat16)
    k2 = jax.random.normal(kk2, (B2, H2, S2, D2), dtype=jnp.bfloat16)
    rope2 = RotaryEmbedding(dim=D2)
    q2_out, k2_out = rope2(q2, k2)
    jax.block_until_ready(q2_out)
    jax.block_until_ready(k2_out)
    q2_ref, k2_ref = _reference(q2, k2, D2)
    assert jnp.allclose(q2_out.astype(jnp.float32), q2_ref.astype(jnp.float32),
                        atol=2e-2, rtol=2e-2)
    assert jnp.allclose(k2_out.astype(jnp.float32), k2_ref.astype(jnp.float32),
                        atol=2e-2, rtol=2e-2)

    print("KERNEL_OK")
</pallas_src>

<mosaic_0001>
module attributes {stable_mosaic.version = 11 : i64} {
  func.func @probe(%arg0: memref<8x128xf32, #tpu.memory_space<vmem>>, %arg1: memref<8x128xf32, #tpu.memory_space<vmem>>) attributes {dimension_semantics = [], scalar_prefetch = 0 : i64, scratch_operands = 0 : i64, tpu.core_type = #tpu.core_type<tc>} {
    %c0 = arith.constant 0 : index
    %c0_0 = arith.constant 0 : index
    %0 = vector.load %arg0[%c0, %c0_0] : memref<8x128xf32, #tpu.memory_space<vmem>>, vector<8x128xf32>
    %c1_i32 = arith.constant 1 : i32
    %1 = tpu.dynamic_rotate %0 by %c1_i32 dim 1 : vector<8x128xf32>, i32 -> vector<8x128xf32>
    %c0_1 = arith.constant 0 : index
    %c0_2 = arith.constant 0 : index
    %2 = vector.load %arg1[%c0_1, %c0_2] : memref<8x128xf32, #tpu.memory_space<vmem>>, vector<8x128xf32>
    tpu.vector_store %arg1[%c0_1, %c0_2], %1 {strides = array<i32>} : memref<8x128xf32, #tpu.memory_space<vmem>>, vector<8x128xf32>,
    return
  }
}

</mosaic_0001>

<llo_original>
// kernel: tpu_custom_call.1
$region0: #{tpu_custom_call.1}
  #allocation0 [shape = 'u32[]', space=smem, size = 0x4, offset = 0x4, fixed_abs, tag = 'smem constant byte address 0x4 - core index']
  #allocation1 [shape = 'u32[144,128]{1,0:T(1,128)}', space=vmem, size = 0x12000, scoped, tag = 'internal scratch']
  %s0 = inlined_call_operand.hbm [shape: f32[8,128], index: 0, kind: input, shape index: {}]
  %s1 = inlined_call_operand.hbm [shape: f32[8,128], index: 1, kind: output, shape index: {}]
  %s2 = sld [smem:[#allocation0]]
  $region18: #{tpu_custom_call.1} parent=0
    _
  %s4 = ssub.s32 1, %s2
  %s5 = scalar_select 0, %s4, %s2
  $region1: #{tpu_custom_call.1} parent=0
    #allocation2 [shape = 'u8[4096]{0}', space=vmem, size = 0x1000, scoped, tag = 'input window, operand 0, single buffered']
    #allocation3 [shape = 's32[1]{0}', space=sflag, size = 0x4, scoped, tag = 'scoped memory for tpu_custom_call.1']
    #allocation4 [shape = 's32[1]{0}', space=sflag, size = 0x4, scoped, tag = 'scoped memory for tpu_custom_call.1']
    #allocation5 [shape = 'u8[4096]{0}', space=vmem, size = 0x1000, scoped, tag = 'output window, operand 0, single buffered']
    %6 = vsyncpa [#allocation3], 0
    %7 = vsyncpa [#allocation4], 0
    // Predicated region
    $region2: #{tpu_custom_call.1} parent=1 // pred_check
      _
    $region3: #{tpu_custom_call.1} parent=1 // pred_check_branch
      %9 = sbr.rel (0) target = $region5
    $region4: #{tpu_custom_call.1} parent=1 // pred_region
      %s11 = ssub.s32 128, 128
      %12 = vsyncadd [#allocation3], %s11
      %s14 = sshll.u32 [#allocation2], 4
      %s15 = int_to_ptr.vmem [resolvable:$true] %s14
      %17 = dma.hbm_to_vmem [thread:$0]  %s0, 128, %s15, [#allocation3]
    $region5: #{tpu_custom_call.1} parent=1 // pred_fallthru
      _
    // Predicated region
    $region6: #{tpu_custom_call.1} parent=1 // pred_check
      _
    $region7: #{tpu_custom_call.1} parent=1 // pred_check_branch
      %19 = sbr.rel (0) target = $region9
    $region8: #{tpu_custom_call.1} parent=1 // pred_region
      %20 = dma.done [#allocation3], 128
    $region9: #{tpu_custom_call.1} parent=1 // pred_fallthru
      _
    %v21 = vld [vmem:[#allocation2] sm:$0xff]
    %22 = vrot.lane.b32.xlu0 %v21, 1
    %v23 = vpop.permute.xlu0 %22
    %24 = vst [vmem:[#allocation5] sm:$0xff] %v23
    // Predicated region
    $region10: #{tpu_custom_call.1} parent=1 // pred_check
      _
    $region11: #{tpu_custom_call.1} parent=1 // pred_check_branch
      %26 = sbr.rel (0) target = $region13
    $region12: #{tpu_custom_call.1} parent=1 // pred_region
      %s28 = ssub.s32 128, 128
      %29 = vsyncadd [#allocation4], %s28
      %s31 = sshll.u32 [#allocation5], 4
      %s32 = int_to_ptr.vmem [resolvable:$true] %s31
      %34 = dma.vmem_to_hbm [thread:$0]  %s32, 128, %s1, [#allocation4]
    $region13: #{tpu_custom_call.1} parent=1 // pred_fallthru
      _
    // Predicated region
    $region14: #{tpu_custom_call.1} parent=1 // pred_check
      _
    $region15: #{tpu_custom_call.1} parent=1 // pred_check_branch
      %36 = sbr.rel (0) target = $region17
    $region16: #{tpu_custom_call.1} parent=1 // pred_region
      %37 = dma.done [#allocation4], 128
    $region17: #{tpu_custom_call.1} parent=1 // pred_fallthru
      _
    %38 = vsyncpa [#allocation3], 1
    %39 = vsyncpa [#allocation4], 1

</llo_original>
